<compile_context>
chip_gen: v7x
topology: tpu7x:2x2x1
jax: 0.10.0
libtpu: 0.0.40
codegen_flags: <defaults>
</compile_context>

<pallas_src>
import functools
import math

import jax
import jax.numpy as jnp
from jax.experimental import pallas as pl
from jax.experimental.pallas import tpu as pltpu


LANE = 128
_NEG_BIG = -1e9  # pad value for WF logit rows/cols: exp() underflows to exactly 0


def _round_up(x, m):
    return (x + m - 1) // m * m


def _pad2d(x, rows, cols, value=0.0):
    r, c = x.shape
    return jnp.pad(x, ((0, rows - r), (0, cols - c)), constant_values=value)


# ---------------------------------------------------------------------------
# Kernels
# ---------------------------------------------------------------------------
def _select_kernel(wf_ref, g_ref, sel_ref, *, tau):
    """sel = gumbel_softmax(WF, tau, hard=False, dim=0)  -- computed once (hoisted)."""
    logits = (wf_ref[...] + g_ref[...]) * (1.0 / tau)
    m = jnp.max(logits, axis=0, keepdims=True)
    e = jnp.exp(logits - m)
    inv = pl.reciprocal(jnp.sum(e, axis=0, keepdims=True), approx=True)  # EUP slot
    sel_ref[...] = (e * inv).astype(sel_ref.dtype)


def _row_matmul_kernel(x_ref, w_ref, out_ref):
    """out_tile = x_tile @ w   (support = features @ sel, gridded over node rows)."""
    out_ref[...] = jnp.dot(
        x_ref[...], w_ref[...], preferred_element_type=jnp.float32
    ).astype(out_ref.dtype)


def _aggregate_kernel(adj_ref, x_ref, w_ref, out_ref, acc_ref):
    """out_row_tile = (sum_k adj[i,k] @ X[k]) @ W  with f32 accumulator scratch."""
    kk = pl.program_id(1)

    @pl.when(kk == 0)
    def _():
        acc_ref[...] = jnp.zeros_like(acc_ref)

    acc_ref[...] += jnp.dot(
        adj_ref[...], x_ref[...], preferred_element_type=jnp.float32
    )

    @pl.when(kk == pl.num_programs(1) - 1)
    def _():
        out_ref[...] = jnp.dot(
            acc_ref[...], w_ref[...], preferred_element_type=jnp.float32
        ).astype(out_ref.dtype)


# ---------------------------------------------------------------------------
# pallas_call wrappers
# ---------------------------------------------------------------------------
_VMEM_SPEC = pl.BlockSpec(memory_space=pltpu.MemorySpace.VMEM)


def _gumbel_select(wf_p, gumbel_p, *, tau, out_dtype):
    in_p, k_p = wf_p.shape
    kern = functools.partial(_select_kernel, tau=float(tau))
    return pl.pallas_call(
        kern,
        out_shape=jax.ShapeDtypeStruct((in_p, k_p), out_dtype),
        in_specs=[_VMEM_SPEC, _VMEM_SPEC],
        out_specs=_VMEM_SPEC,
    )(wf_p, gumbel_p)


def _row_matmul(x_p, w_p, *, tile_n, out_dtype, vmem_limit_bytes):
    n_p, kdim = x_p.shape
    ncols = w_p.shape[1]
    return pl.pallas_call(
        _row_matmul_kernel,
        out_shape=jax.ShapeDtypeStruct((n_p, ncols), out_dtype),
        grid_spec=pltpu.PrefetchScalarGridSpec(
            num_scalar_prefetch=0,
            grid=(n_p // tile_n,),
            in_specs=[
                pl.BlockSpec((tile_n, kdim), lambda i: (i, 0)),
                pl.BlockSpec((kdim, ncols), lambda i: (0, 0)),
            ],
            out_specs=pl.BlockSpec((tile_n, ncols), lambda i: (i, 0)),
        ),
        compiler_params=pltpu.CompilerParams(
            dimension_semantics=("parallel",),
            vmem_limit_bytes=vmem_limit_bytes,
        ),
    )(x_p, w_p)


def _aggregate(adj_p, x_p, w_p, *, tile_n, vmem_limit_bytes):
    n_p = adj_p.shape[0]
    f = x_p.shape[1]
    out_p = w_p.shape[1]
    return pl.pallas_call(
        _aggregate_kernel,
        out_shape=jax.ShapeDtypeStruct((n_p, out_p), jnp.float32),
        grid_spec=pltpu.PrefetchScalarGridSpec(
            num_scalar_prefetch=0,
            grid=(n_p // tile_n, n_p // tile_n),  # (row tiles, reduction) -- reduction last
            in_specs=[
                pl.BlockSpec((tile_n, tile_n), lambda i, k: (i, k)),  # adj tile
                pl.BlockSpec((tile_n, f), lambda i, k: (k, 0)),       # X row-block
                pl.BlockSpec((f, out_p), lambda i, k: (0, 0)),        # weight (resident)
            ],
            out_specs=pl.BlockSpec((tile_n, out_p), lambda i, k: (i, 0)),
            scratch_shapes=[pltpu.VMEM((tile_n, f), jnp.float32)],
        ),
        compiler_params=pltpu.CompilerParams(
            dimension_semantics=("parallel", "arbitrary"),
            vmem_limit_bytes=vmem_limit_bytes,
        ),
    )(adj_p, x_p, w_p)


# ---------------------------------------------------------------------------
# Forward (mirrors GraphConvolution.forward)
# ---------------------------------------------------------------------------
def gcn_forward(features, adj, weight, *, wf=None, gumbel_noise=None, flag=False,
                temp=1.0, tile_n=256, use_bf16=True,
                vmem_limit_bytes=48 * 1024 * 1024):
    assert tile_n % LANE == 0, "tile_n must be a multiple of 128"
    n, in_f = features.shape
    out_f = weight.shape[1]

    n_p = _round_up(n, tile_n)
    in_p = _round_up(in_f, LANE)
    out_p = _round_up(out_f, LANE)
    mxu_dtype = jnp.bfloat16 if use_bf16 else jnp.float32

    adj_p = _pad2d(adj, n_p, n_p).astype(mxu_dtype)
    w_p = _pad2d(weight, _round_up(weight.shape[0], LANE), out_p).astype(jnp.float32)

    if flag:
        # feature-selection branch: X = features @ gumbel_softmax(WF, tau, dim=0)
        k = wf.shape[1]
        k_p = _round_up(k, LANE)
        feat_p = _pad2d(features, n_p, in_p).astype(mxu_dtype)
        wf_p = _pad2d(wf, in_p, k_p, value=_NEG_BIG)      # padded rows vanish in softmax
        g_p = _pad2d(gumbel_noise, in_p, k_p)
        sel = _gumbel_select(wf_p, g_p, tau=temp, out_dtype=mxu_dtype)     # [in_p, k_p]
        x_p = _row_matmul(feat_p, sel, tile_n=tile_n, out_dtype=mxu_dtype,
                          vmem_limit_bytes=vmem_limit_bytes)               # [n_p, k_p]
    else:
        x_p = _pad2d(features, n_p, in_p).astype(mxu_dtype)                # [n_p, in_p]

    out_full = _aggregate(adj_p, x_p, w_p, tile_n=tile_n,
                          vmem_limit_bytes=vmem_limit_bytes)               # [n_p, out_p]
    return out_full[:n, :out_f]


# ---------------------------------------------------------------------------
# Helpers (mirror reset_parameters / gumbel sampling)
# ---------------------------------------------------------------------------
def sample_gumbel(key, shape, eps=1e-10):
    u = jax.random.uniform(key, shape, minval=eps, maxval=1.0 - eps, dtype=jnp.float32)
    return -jnp.log(-jnp.log(u))


# ---------------------------------------------------------------------------
# Main
# ---------------------------------------------------------------------------
if __name__ == "__main__":
    # Small shapes consistent with the module (nodes x features graph layer).
    N = 200
    in_features = 40
    featuresSelected = 8   # self.k
    out_features = 16
    temp = 1.0
    tile_n = 128           # small demo tile; use 256-1024 for real graphs

    root = jax.random.PRNGKey(0)
    k_feat, k_adj, k_w1, k_wf, k_w2, k_gum = jax.random.split(root, 6)

    features = jax.random.normal(k_feat, (N, in_features), dtype=jnp.float32)
    a = jax.random.uniform(k_adj, (N, N), dtype=jnp.float32)
    adj = (a + a.T) * 0.5
    adj = adj / jnp.sum(adj, axis=1, keepdims=True)

    # flag2=True parameters: WF [in, k], weight [k, out]
    stdv = 1.0 / math.sqrt(out_features)
    weight_fs = jax.random.uniform(k_w1, (featuresSelected, out_features),
                                   minval=-stdv, maxval=stdv, dtype=jnp.float32)
    stdv2 = 1.0 / math.sqrt(featuresSelected)
    wf = jax.random.uniform(k_wf, (in_features, featuresSelected),
                            minval=-stdv2, maxval=stdv2, dtype=jnp.float32)
    # flag2=False parameters: weight [in, out]
    weight_plain = jax.random.uniform(k_w2, (in_features, out_features),
                                      minval=-stdv, maxval=stdv, dtype=jnp.float32)

    gumbel = sample_gumbel(k_gum, wf.shape)

    def q(x):  # matches the kernels' bf16 quantization of MXU operands
        return x.astype(jnp.bfloat16).astype(jnp.float32)

    # --- flag=True path (feature-selection branch) --------------------------
    out_fs = gcn_forward(features, adj, weight_fs, wf=wf, gumbel_noise=gumbel,
                         flag=True, temp=temp, tile_n=tile_n, use_bf16=True)
    jax.block_until_ready(out_fs)

    sel_ref = jax.nn.softmax((wf + gumbel) / temp, axis=0)
    support_ref = q(features) @ q(sel_ref)
    ref_fs = (q(adj) @ q(support_ref)) @ weight_fs
    assert jnp.allclose(out_fs, ref_fs, atol=1e-2, rtol=1e-2), \
        float(jnp.max(jnp.abs(out_fs - ref_fs)))

    # --- flag=False path -----------------------------------------------------
    out_plain = gcn_forward(features, adj, weight_plain, flag=False,
                            temp=temp, tile_n=tile_n, use_bf16=True)
    jax.block_until_ready(out_plain)
    ref_plain = (q(adj) @ q(features)) @ weight_plain
    assert jnp.allclose(out_plain, ref_plain, atol=1e-2, rtol=1e-2), \
        float(jnp.max(jnp.abs(out_plain - ref_plain)))

    print("KERNEL_OK")
</pallas_src>

<mosaic_0001>
module attributes {stable_mosaic.version = 11 : i64} {
  func.func @_select_kernel(%arg0: memref<128x128xf32, #tpu.memory_space<vmem>>, %arg1: memref<128x128xf32, #tpu.memory_space<vmem>>, %arg2: memref<128x128xbf16, #tpu.memory_space<vmem>>) attributes {dimension_semantics = [], scalar_prefetch = 0 : i64, scratch_operands = 0 : i64, tpu.core_type = #tpu.core_type<tc>} {
    %c0 = arith.constant 0 : index
    %c0_0 = arith.constant 0 : index
    %0 = vector.load %arg0[%c0, %c0_0] : memref<128x128xf32, #tpu.memory_space<vmem>>, vector<128x128xf32>
    %c0_1 = arith.constant 0 : index
    %c0_2 = arith.constant 0 : index
    %1 = vector.load %arg1[%c0_1, %c0_2] : memref<128x128xf32, #tpu.memory_space<vmem>>, vector<128x128xf32>
    %2 = arith.addf %0, %1 : vector<128x128xf32>
    %cst = arith.constant 1.000000e+00 : f32
    %3 = vector.broadcast %cst : f32 to vector<128x128xf32>
    %4 = arith.mulf %2, %3 : vector<128x128xf32>
    %cst_3 = arith.constant dense<0xFF800000> : vector<128xf32>
    %5 = vector.multi_reduction <maximumf>, %4, %cst_3 [0] : vector<128x128xf32> to vector<128xf32>
    %6 = vector.shape_cast %5 : vector<128xf32> to vector<1x128xf32>
    %7 = vector.broadcast %6 : vector<1x128xf32> to vector<128x128xf32>
    %8 = arith.subf %4, %7 : vector<128x128xf32>
    %9 = math.exp %8 : vector<128x128xf32>
    %cst_4 = arith.constant dense<0.000000e+00> : vector<128xf32>
    %10 = vector.multi_reduction <add>, %9, %cst_4 [0] : vector<128x128xf32> to vector<128xf32>
    %11 = vector.shape_cast %10 : vector<128xf32> to vector<1x128xf32>
    %12 = tpu.reciprocal %11 {approx = true} : vector<1x128xf32> -> vector<1x128xf32>
    %13 = vector.broadcast %12 : vector<1x128xf32> to vector<128x128xf32>
    %14 = arith.mulf %9, %13 : vector<128x128xf32>
    %15 = arith.truncf %14 : vector<128x128xf32> to vector<128x128xbf16>
    %c0_5 = arith.constant 0 : index
    %c0_6 = arith.constant 0 : index
    %16 = vector.load %arg2[%c0_5, %c0_6] : memref<128x128xbf16, #tpu.memory_space<vmem>>, vector<128x128xbf16>
    tpu.vector_store %arg2[%c0_5, %c0_6], %15 {strides = array<i32>} : memref<128x128xbf16, #tpu.memory_space<vmem>>, vector<128x128xbf16>,
    return
  }
}

</mosaic_0001>

<llo_original>
// kernel: tpu_custom_call.1
$region0: #{tpu_custom_call.1}
  #allocation0 [shape = 'u32[]', space=smem, size = 0x4, offset = 0x4, fixed_abs, tag = 'smem constant byte address 0x4 - core index']
  #allocation1 [shape = 'u32[144,128]{1,0:T(1,128)}', space=vmem, size = 0x12000, scoped, tag = 'internal scratch']
  %s0 = inlined_call_operand.hbm [shape: f32[128,128], index: 0, kind: input, shape index: {}]
  %s1 = inlined_call_operand.hbm [shape: f32[128,128], index: 1, kind: input, shape index: {}]
  %s2 = inlined_call_operand.hbm [shape: bf16[128,128], index: 2, kind: output, shape index: {}]
  %s3 = sld [smem:[#allocation0]]
  $region26: #{tpu_custom_call.1} parent=0
    _
  %s5 = ssub.s32 1, %s3
  %s6 = scalar_select 0, %s5, %s3
  $region1: #{tpu_custom_call.1} parent=0
    #allocation2 [shape = 'u8[65536]{0}', space=vmem, size = 0x10000, scoped, tag = 'input window, operand 0, single buffered']
    #allocation3 [shape = 's32[1]{0}', space=sflag, size = 0x4, scoped, tag = 'scoped memory for tpu_custom_call.1']
    #allocation4 [shape = 's32[1]{0}', space=sflag, size = 0x4, scoped, tag = 'scoped memory for tpu_custom_call.1']
    #allocation5 [shape = 'u8[65536]{0}', space=vmem, size = 0x10000, scoped, tag = 'input window, operand 1, single buffered']
    #allocation6 [shape = 's32[1]{0}', space=sflag, size = 0x4, scoped, tag = 'scoped memory for tpu_custom_call.1']
    #allocation7 [shape = 'u8[32768]{0}', space=vmem, size = 0x8000, scoped, tag = 'output window, operand 0, single buffered']
    %7 = vsyncpa [#allocation3], 0
    %8 = vsyncpa [#allocation6], 0
    %9 = vsyncpa [#allocation4], 0
    // Predicated region
    $region2: #{tpu_custom_call.1} parent=1 // pred_check
      _
    $region3: #{tpu_custom_call.1} parent=1 // pred_check_branch
      %11 = sbr.rel (0) target = $region5
    $region4: #{tpu_custom_call.1} parent=1 // pred_region
      %s13 = ssub.s32 2048, 2048
      %14 = vsyncadd [#allocation3], %s13
      %s15 = sshll.u32 [#allocation2], 4
      %s16 = int_to_ptr.vmem [resolvable:$true] %s15
      %21 = dma.hbm_to_vmem [thread:$0]  %s0, 2048, %s16, [#allocation3], 128, 128, 8
    $region5: #{tpu_custom_call.1} parent=1 // pred_fallthru
      _
    // Predicated region
    $region6: #{tpu_custom_call.1} parent=1 // pred_check
      _
    $region7: #{tpu_custom_call.1} parent=1 // pred_check_branch
      %23 = sbr.rel (0) target = $region9
    $region8: #{tpu_custom_call.1} parent=1 // pred_region
      %s25 = ssub.s32 2048, 2048
      %26 = vsyncadd [#allocation6], %s25
      %s27 = sshll.u32 [#allocation5], 4
      %s28 = int_to_ptr.vmem [resolvable:$true] %s27
      %33 = dma.hbm_to_vmem [thread:$0]  %s1, 2048, %s28, [#allocation6], 128, 128, 8
    $region9: #{tpu_custom_call.1} parent=1 // pred_fallthru
      _
    // Predicated region
    $region10: #{tpu_custom_call.1} parent=1 // pred_check
      _
    $region11: #{tpu_custom_call.1} parent=1 // pred_check_branch
      %35 = sbr.rel (0) target = $region13
    $region12: #{tpu_custom_call.1} parent=1 // pred_region
      %36 = dma.done [#allocation3], 2048
    $region13: #{tpu_custom_call.1} parent=1 // pred_fallthru
      _
    // Predicated region
    $region14: #{tpu_custom_call.1} parent=1 // pred_check
      _
    $region15: #{tpu_custom_call.1} parent=1 // pred_check_branch
      %38 = sbr.rel (0) target = $region17
    $region16: #{tpu_custom_call.1} parent=1 // pred_region
      %39 = dma.done [#allocation6], 2048
    $region17: #{tpu_custom_call.1} parent=1 // pred_fallthru
      _
    %v40 = vld [vmem:[#allocation2] sm:$0xff]
    %v41 = vld [vmem:[#allocation2 + $0x8] sm:$0xff]
    %v42 = vld [vmem:[#allocation2 + $0x10] sm:$0xff]
    %v43 = vld [vmem:[#allocation2 + $0x18] sm:$0xff]
    %v44 = vld [vmem:[#allocation2 + $0x20] sm:$0xff]
    %v45 = vld [vmem:[#allocation2 + $0x28] sm:$0xff]
    %v46 = vld [vmem:[#allocation2 + $0x30] sm:$0xff]
    %v47 = vld [vmem:[#allocation2 + $0x38] sm:$0xff]
    %v48 = vld [vmem:[#allocation2 + $0x40] sm:$0xff]
    %v49 = vld [vmem:[#allocation2 + $0x48] sm:$0xff]
    %v50 = vld [vmem:[#allocation2 + $0x50] sm:$0xff]
    %v51 = vld [vmem:[#allocation2 + $0x58] sm:$0xff]
    %v52 = vld [vmem:[#allocation2 + $0x60] sm:$0xff]
    %v53 = vld [vmem:[#allocation2 + $0x68] sm:$0xff]
    %v54 = vld [vmem:[#allocation2 + $0x70] sm:$0xff]
    %v55 = vld [vmem:[#allocation2 + $0x78] sm:$0xff]
    %v56 = vld [vmem:[#allocation5] sm:$0xff]
    %v57 = vld [vmem:[#allocation5 + $0x8] sm:$0xff]
    %v58 = vld [vmem:[#allocation5 + $0x10] sm:$0xff]
    %v59 = vld [vmem:[#allocation5 + $0x18] sm:$0xff]
    %v60 = vld [vmem:[#allocation5 + $0x20] sm:$0xff]
    %v61 = vld [vmem:[#allocation5 + $0x28] sm:$0xff]
    %v62 = vld [vmem:[#allocation5 + $0x30] sm:$0xff]
    %v63 = vld [vmem:[#allocation5 + $0x38] sm:$0xff]
    %v64 = vld [vmem:[#allocation5 + $0x40] sm:$0xff]
    %v65 = vld [vmem:[#allocation5 + $0x48] sm:$0xff]
    %v66 = vld [vmem:[#allocation5 + $0x50] sm:$0xff]
    %v67 = vld [vmem:[#allocation5 + $0x58] sm:$0xff]
    %v68 = vld [vmem:[#allocation5 + $0x60] sm:$0xff]
    %v69 = vld [vmem:[#allocation5 + $0x68] sm:$0xff]
    %v70 = vld [vmem:[#allocation5 + $0x70] sm:$0xff]
    %v71 = vld [vmem:[#allocation5 + $0x78] sm:$0xff]
    %v72 = vadd.f32 %v40, %v56
    %v73 = vadd.f32 %v41, %v57
    %v74 = vadd.f32 %v42, %v58
    %v75 = vadd.f32 %v43, %v59
    %v76 = vadd.f32 %v44, %v60
    %v77 = vadd.f32 %v45, %v61
    %v78 = vadd.f32 %v46, %v62
    %v79 = vadd.f32 %v47, %v63
    %v80 = vadd.f32 %v48, %v64
    %v81 = vadd.f32 %v49, %v65
    %v82 = vadd.f32 %v50, %v66
    %v83 = vadd.f32 %v51, %v67
    %v84 = vadd.f32 %v52, %v68
    %v85 = vadd.f32 %v53, %v69
    %v86 = vadd.f32 %v54, %v70
    %v87 = vadd.f32 %v55, %v71
    %v88 = vmax.f32 %v72, %v76
    %v89 = vmax.f32 %v73, %v77
    %v90 = vmax.f32 %v74, %v78
    %v91 = vmax.f32 %v75, %v79
    %v92 = vmax.f32 %v88, %v80
    %v93 = vmax.f32 %v89, %v81
    %v94 = vmax.f32 %v90, %v82
    %v95 = vmax.f32 %v91, %v83
    %v96 = vmax.f32 %v92, %v84
    %v97 = vmax.f32 %v93, %v85
    %v98 = vmax.f32 %v94, %v86
    %v99 = vmax.f32 %v95, %v87
    %v100 = vmax.f32 %v96, %v97
    %v101 = vmax.f32 %v98, %v99
    %v102 = vmax.f32 %v100, %v101
    %v103 = vrot.slane %v102, 4
    %v104 = vmax.f32 %v102, %v103
    %v105 = vrot.slane %v104, 2
    %v106 = vmax.f32 %v104, %v105
    %v107 = vrot.slane %v106, 1
    %v108 = vmax.f32 %v106, %v107
    %v109 = vsub.f32 %v72, %v108
    %v110 = vsub.f32 %v73, %v108
    %v111 = vsub.f32 %v74, %v108
    %v112 = vsub.f32 %v75, %v108
    %v113 = vsub.f32 %v76, %v108
    %v114 = vsub.f32 %v77, %v108
    %v115 = vsub.f32 %v78, %v108
    %v116 = vsub.f32 %v79, %v108
    %v117 = vsub.f32 %v80, %v108
    %v118 = vsub.f32 %v81, %v108
    %v119 = vsub.f32 %v82, %v108
    %v120 = vsub.f32 %v83, %v108
    %v121 = vsub.f32 %v84, %v108
    %v122 = vsub.f32 %v85, %v108
    %v123 = vsub.f32 %v86, %v108
    %v124 = vsub.f32 %v87, %v108
    %v125 = vmul.f32 %v109, 1.442695
    %v126 = vpow.pop %v125
    %v127 = vmul.f32 %v110, 1.442695
    %v128 = vpow.pop %v127
    %v129 = vmul.f32 %v111, 1.442695
    %v130 = vpow.pop %v129
    %v131 = vmul.f32 %v112, 1.442695
    %v132 = vpow.pop %v131
    %v133 = vmul.f32 %v113, 1.442695
    %v134 = vpow.pop %v133
    %v135 = vmul.f32 %v114, 1.442695
    %v136 = vpow.pop %v135
    %v137 = vmul.f32 %v115, 1.442695
    %v138 = vpow.pop %v137
    %v139 = vmul.f32 %v116, 1.442695
    %v140 = vpow.pop %v139
    %v141 = vmul.f32 %v117, 1.442695
    %v142 = vpow.pop %v141
    %v143 = vmul.f32 %v118, 1.442695
    %v144 = vpow.pop %v143
    %v145 = vmul.f32 %v119, 1.442695
    %v146 = vpow.pop %v145
    %v147 = vmul.f32 %v120, 1.442695
    %v148 = vpow.pop %v147
    %v149 = vmul.f32 %v121, 1.442695
    %v150 = vpow.pop %v149
    %v151 = vmul.f32 %v122, 1.442695
    %v152 = vpow.pop %v151
    %v153 = vmul.f32 %v123, 1.442695
    %v154 = vpow.pop %v153
    %v155 = vmul.f32 %v124, 1.442695
    %v156 = vpow.pop %v155
    %v157 = vadd.f32 %v126, %v128
    %v158 = vadd.f32 %v157, %v130
    %v159 = vadd.f32 %v158, %v132
    %v160 = vadd.f32 %v159, %v134
    %v161 = vadd.f32 %v160, %v136
    %v162 = vadd.f32 %v161, %v138
    %v163 = vadd.f32 %v162, %v140
    %v164 = vadd.f32 %v163, %v142
    %v165 = vadd.f32 %v164, %v144
    %v166 = vadd.f32 %v165, %v146
    %v167 = vadd.f32 %v166, %v148
    %v168 = vadd.f32 %v167, %v150
    %v169 = vadd.f32 %v168, %v152
    %v170 = vadd.f32 %v169, %v154
    %v171 = vadd.f32 %v170, %v156
    %v172 = vrot.slane %v171, 4
    %v173 = vadd.f32 %v171, %v172
    %v174 = vrot.slane %v173, 2
    %v175 = vadd.f32 %v173, %v174
    %v176 = vrot.slane %v175, 1
    %v177 = vadd.f32 %v175, %v176
    %v178 = vrcp.pop %v177
    %v179 = vmul.f32 %v126, %v178
    %v180 = vmul.f32 %v128, %v178
    %v181 = vmul.f32 %v130, %v178
    %v182 = vmul.f32 %v132, %v178
    %v183 = vmul.f32 %v134, %v178
    %v184 = vmul.f32 %v136, %v178
    %v185 = vmul.f32 %v138, %v178
    %v186 = vmul.f32 %v140, %v178
    %v187 = vmul.f32 %v142, %v178
    %v188 = vmul.f32 %v144, %v178
    %v189 = vmul.f32 %v146, %v178
    %v190 = vmul.f32 %v148, %v178
    %v191 = vmul.f32 %v150, %v178
    %v192 = vmul.f32 %v152, %v178
    %v193 = vmul.f32 %v154, %v178
    %v194 = vmul.f32 %v156, %v178
    %v195 = vpack.c.bf16 %v180, %v179
    %v196 = vpack.c.bf16 %v182, %v181
    %v197 = vpack.c.bf16 %v184, %v183
    %v198 = vpack.c.bf16 %v186, %v185
    %v199 = vpack.c.bf16 %v188, %v187
    %v200 = vpack.c.bf16 %v190, %v189
    %v201 = vpack.c.bf16 %v192, %v191
    %v202 = vpack.c.bf16 %v194, %v193
    %v211 = vunpack.c.l.b16 %v195
    %v212 = vunpack.c.h.b16 %v195
    %v213 = vunpack.c.l.b16 %v196
    %v214 = vunpack.c.h.b16 %v196
    %v215 = vunpack.c.l.b16 %v197
    %v216 = vunpack.c.h.b16 %v197
    %v217 = vunpack.c.l.b16 %v198
    %v218 = vunpack.c.h.b16 %v198
    %v219 = vunpack.c.l.b16 %v199
    %v220 = vunpack.c.h.b16 %v199
    %v221 = vunpack.c.l.b16 %v200
    %v222 = vunpack.c.h.b16 %v200
    %v223 = vunpack.c.l.b16 %v201
    %v224 = vunpack.c.h.b16 %v201
    %v225 = vunpack.c.l.b16 %v202
    %v226 = vunpack.c.h.b16 %v202
    %v227 = vpack.c.b16 %v211, %v211
    %v228 = vpack.c.b16 %v212, %v212
    %v229 = vpack.c.b16 %v213, %v213
    %v230 = vpack.c.b16 %v214, %v214
    %v231 = vpack.c.b16 %v215, %v215
    %v232 = vpack.c.b16 %v216, %v216
    %v233 = vpack.c.b16 %v217, %v217
    %v234 = vpack.c.b16 %v218, %v218
    %v235 = vpack.c.b16 %v219, %v219
    %v236 = vpack.c.b16 %v220, %v220
    %v237 = vpack.c.b16 %v221, %v221
    %v238 = vpack.c.b16 %v222, %v222
    %v239 = vpack.c.b16 %v223, %v223
    %v240 = vpack.c.b16 %v224, %v224
    %v241 = vpack.c.b16 %v225, %v225
    %v242 = vpack.c.b16 %v226, %v226
    %259 = vst [vmem:[#allocation7] sm:$0xf] %v227
    %260 = vst [vmem:[#allocation7 + $0x4] sm:$0xf] %v228
    %261 = vst [vmem:[#allocation7 + $0x8] sm:$0xf] %v229
    %262 = vst [vmem:[#allocation7 + $0xc] sm:$0xf] %v230
    %263 = vst [vmem:[#allocation7 + $0x10] sm:$0xf] %v231
    %264 = vst [vmem:[#allocation7 + $0x14] sm:$0xf] %v232
    %265 = vst [vmem:[#allocation7 + $0x18] sm:$0xf] %v233
    %266 = vst [vmem:[#allocation7 + $0x1c] sm:$0xf] %v234
    %267 = vst [vmem:[#allocation7 + $0x20] sm:$0xf] %v235
    %268 = vst [vmem:[#allocation7 + $0x24] sm:$0xf] %v236
    %269 = vst [vmem:[#allocation7 + $0x28] sm:$0xf] %v237
    %270 = vst [vmem:[#allocation7 + $0x2c] sm:$0xf] %v238
    %271 = vst [vmem:[#allocation7 + $0x30] sm:$0xf] %v239
    %272 = vst [vmem:[#allocation7 + $0x34] sm:$0xf] %v240
    %273 = vst [vmem:[#allocation7 + $0x38] sm:$0xf] %v241
    %274 = vst [vmem:[#allocation7 + $0x3c] sm:$0xf] %v242
    // Predicated region
    $region18: #{tpu_custom_call.1} parent=1 // pred_check
      _
    $region19: #{tpu_custom_call.1} parent=1 // pred_check_branch
      %276 = sbr.rel (0) target = $region21
    $region20: #{tpu_custom_call.1} parent=1 // pred_region
      %s278 = ssub.s32 1024, 1024
      %279 = vsyncadd [#allocation4], %s278
      %s280 = sshll.u32 [#allocation7], 4
      %s281 = int_to_ptr.vmem [resolvable:$true] %s280
      %286 = dma.vmem_to_hbm [thread:$0]  %s281, 1024, %s2, [#allocation4], 64, 64, 4
    $region21: #{tpu_custom_call.1} parent=1 // pred_fallthru
      _
    // Predicated region
    $region22: #{tpu_custom_call.1} parent=1 // pred_check
      _
    $region23: #{tpu_custom_call.1} parent=1 // pred_check_branch
      %288 = sbr.rel (0) target = $region25
    $region24: #{tpu_custom_call.1} parent=1 // pred_region
      %289 = dma.done [#allocation4], 1024
    $region25: #{tpu_custom_call.1} parent=1 // pred_fallthru
      _
    %290 = vsyncpa [#allocation3], 1
    %291 = vsyncpa [#allocation6], 1
    %292 = vsyncpa [#allocation4], 1

</llo_original>
